<compile_context>
chip_gen: v7x
topology: tpu7x:2x2x1
jax: 0.10.0
libtpu: 0.0.40
codegen_flags: <defaults>
</compile_context>

<pallas_src>
import math
import functools

import jax
import jax.numpy as jnp
from jax.experimental import pallas as pl
from jax.experimental.pallas import tpu as pltpu


VMEM_LIMIT = 48 * 1024 * 1024  # explicit scoped-VMEM budget (fits v7x's 64 MiB physical VMEM)


def _layernorm(v, gamma, beta, eps=1e-5):
    mu = jnp.mean(v, axis=-1, keepdims=True)
    var = jnp.mean((v - mu) ** 2, axis=-1, keepdims=True)
    return (v - mu) * jax.lax.rsqrt(var + eps) * gamma + beta


# --------------------------------------------------------------------------- #
# Kernel 1: fused (Q|K|V) projection, tiled over rows x output columns.
# --------------------------------------------------------------------------- #
def qkv_proj_kernel(x_ref, w_ref, b_ref, qkv_ref):
    x = x_ref[...].astype(jnp.bfloat16)                               # (TR, H)
    acc = jnp.dot(x, w_ref[...], preferred_element_type=jnp.float32)  # (TR, TC)
    qkv_ref[...] = (acc + b_ref[...]).astype(qkv_ref.dtype)


# --------------------------------------------------------------------------- #
# Kernel 2: flash-style multi-head attention + out-proj + residual + LayerNorm1.
# grid = (B, S//TQ, S//TK); kv axis is the (innermost) "arbitrary" reduction axis.
# --------------------------------------------------------------------------- #
def attn_kernel(q_ref, k_ref, v_ref, x_ref, wo_ref, bo_ref, g1_ref, be1_ref,
                o_ref, m_sc, l_sc, acc_sc, *, num_heads, head_dim):
    kj = pl.program_id(2)
    nk = pl.num_programs(2)

    @pl.when(kj == 0)
    def _init():
        m_sc[...] = jnp.full_like(m_sc, -jnp.inf)
        l_sc[...] = jnp.zeros_like(l_sc)
        acc_sc[...] = jnp.zeros_like(acc_sc)

    q = q_ref[0]   # (TQ, H) bf16, already scaled by 1/sqrt(head_dim)
    k = k_ref[0]   # (TK, H) bf16
    v = v_ref[0]   # (TK, H) bf16

    for h in range(num_heads):                                   # static unroll
        lo, hi = h * head_dim, (h + 1) * head_dim
        qh, kh, vh = q[:, lo:hi], k[:, lo:hi], v[:, lo:hi]       # (TQ,d), (TK,d), (TK,d)
        # Contract over the shared last dim -> no materialized k transpose.
        s = jax.lax.dot_general(qh, kh, (((1,), (1,)), ((), ())),
                                preferred_element_type=jnp.float32)  # (TQ, TK)
        m_prev = m_sc[h]                                         # (TQ, 1)
        m_new = jnp.maximum(m_prev, jnp.max(s, axis=-1, keepdims=True))
        alpha = jnp.exp(m_prev - m_new)
        p = jnp.exp(s - m_new)                                   # (TQ, TK)
        l_sc[h] = alpha * l_sc[h] + jnp.sum(p, axis=-1, keepdims=True)
        acc_sc[h] = alpha * acc_sc[h] + jnp.dot(
            p.astype(jnp.bfloat16), vh, preferred_element_type=jnp.float32)
        m_sc[h] = m_new

    @pl.when(kj == nk - 1)
    def _finalize():
        tq = q.shape[0]
        hidden = wo_ref.shape[1]
        # Per-head accumulation through Wo row-slices: no concat / relayout.
        attn = jnp.zeros((tq, hidden), jnp.float32)
        for h in range(num_heads):
            inv_l = pl.reciprocal(l_sc[h], approx=True)           # EUP, not VALU divide
            ctx_h = (acc_sc[h] * inv_l).astype(jnp.bfloat16)      # (TQ, d)
            wo_h = wo_ref[h * head_dim:(h + 1) * head_dim, :]     # (d, H) sublane slice
            attn = attn + jnp.dot(ctx_h, wo_h, preferred_element_type=jnp.float32)
        y = x_ref[0] + attn + bo_ref[...]                         # residual (f32)
        o_ref[0] = _layernorm(y, g1_ref[...], be1_ref[...]).astype(o_ref.dtype)


# --------------------------------------------------------------------------- #
# Kernel 3: FeedForward tiled over the 4H hidden dim (+ residual + LayerNorm2).
# grid = (BS//TR, 4H//TF); the 4H axis is the "arbitrary" accumulation axis.
# --------------------------------------------------------------------------- #
def ffn_kernel(x1_ref, w1_ref, b1_ref, w2_ref, b2_ref, g2_ref, be2_ref,
               o_ref, acc_sc):
    f = pl.program_id(1)
    nf = pl.num_programs(1)

    @pl.when(f == 0)
    def _init():
        acc_sc[...] = jnp.zeros_like(acc_sc)

    x1 = x1_ref[...]                                              # (TR, H) f32
    h1 = jnp.dot(x1.astype(jnp.bfloat16), w1_ref[...],
                 preferred_element_type=jnp.float32) + b1_ref[...]  # (TR, TF)
    h1 = jax.nn.gelu(h1, approximate=False)                       # erf GELU = F.gelu default
    acc_sc[...] += jnp.dot(h1.astype(jnp.bfloat16), w2_ref[...],
                           preferred_element_type=jnp.float32)    # (TR, H)

    @pl.when(f == nf - 1)
    def _finalize():
        y = x1 + acc_sc[...] + b2_ref[...]                        # residual (f32)
        o_ref[...] = _layernorm(y, g2_ref[...], be2_ref[...]).astype(o_ref.dtype)


# --------------------------------------------------------------------------- #
# Wrapper
# --------------------------------------------------------------------------- #
def transformer_layer(x, params, num_heads):
    B, S, H = x.shape
    assert H % num_heads == 0
    d = H // num_heads
    BS, FH = B * S, 4 * H
    scale = 1.0 / math.sqrt(d)

    # Pack Q|K|V weights (softmax scale folded into the Q slice); weights in bf16.
    wqkv = jnp.concatenate(
        [params["wq"] * scale, params["wk"], params["wv"]], axis=1).astype(jnp.bfloat16)
    bqkv = jnp.concatenate(
        [params["bq"] * scale, params["bk"], params["bv"]], axis=1).astype(jnp.float32)
    wo = params["wo"].astype(jnp.bfloat16)
    w1 = params["w1"].astype(jnp.bfloat16)
    w2 = params["w2"].astype(jnp.bfloat16)

    def tile(n, cap):
        t = min(n, cap)
        assert n % t == 0, f"tile {t} must divide {n}"
        return t

    TR = tile(BS, 256)        # row tile over flattened (B*S)
    TQ = tile(S, 128)         # query tile
    TK = tile(S, 128)         # key/value tile
    TC = tile(3 * H, 512)     # qkv output-column tile
    TF = tile(FH, 512)        # ffn hidden-column tile

    # ---- 1) fused QKV projection ------------------------------------------------
    x2d = x.reshape(BS, H)
    qkv2d = pl.pallas_call(
        qkv_proj_kernel,
        out_shape=jax.ShapeDtypeStruct((BS, 3 * H), jnp.bfloat16),
        grid=(BS // TR, (3 * H) // TC),
        in_specs=[
            pl.BlockSpec((TR, H), lambda r, c: (r, 0)),
            pl.BlockSpec((H, TC), lambda r, c: (0, c)),
            pl.BlockSpec((1, TC), lambda r, c: (0, c)),
        ],
        out_specs=pl.BlockSpec((TR, TC), lambda r, c: (r, c)),
        compiler_params=pltpu.CompilerParams(
            dimension_semantics=("parallel", "parallel"),
            vmem_limit_bytes=VMEM_LIMIT),
    )(x2d, wqkv, bqkv)
    q = qkv2d[:, :H].reshape(B, S, H)
    k = qkv2d[:, H:2 * H].reshape(B, S, H)
    v = qkv2d[:, 2 * H:].reshape(B, S, H)

    # ---- 2) flash-style attention + out-proj + residual + LayerNorm1 ------------
    x1 = pl.pallas_call(
        functools.partial(attn_kernel, num_heads=num_heads, head_dim=d),
        out_shape=jax.ShapeDtypeStruct((B, S, H), jnp.float32),
        grid=(B, S // TQ, S // TK),
        in_specs=[
            pl.BlockSpec((1, TQ, H), lambda b, qi, kj: (b, qi, 0)),   # q (scaled)
            pl.BlockSpec((1, TK, H), lambda b, qi, kj: (b, kj, 0)),   # k
            pl.BlockSpec((1, TK, H), lambda b, qi, kj: (b, kj, 0)),   # v
            pl.BlockSpec((1, TQ, H), lambda b, qi, kj: (b, qi, 0)),   # x (residual)
            pl.BlockSpec((H, H), lambda b, qi, kj: (0, 0)),           # wo
            pl.BlockSpec((1, H), lambda b, qi, kj: (0, 0)),           # bo
            pl.BlockSpec((1, H), lambda b, qi, kj: (0, 0)),           # gamma1
            pl.BlockSpec((1, H), lambda b, qi, kj: (0, 0)),           # beta1
        ],
        out_specs=pl.BlockSpec((1, TQ, H), lambda b, qi, kj: (b, qi, 0)),
        scratch_shapes=[
            pltpu.VMEM((num_heads, TQ, 1), jnp.float32),   # running max  m
            pltpu.VMEM((num_heads, TQ, 1), jnp.float32),   # running denom l
            pltpu.VMEM((num_heads, TQ, d), jnp.float32),   # running ctx accumulator
        ],
        compiler_params=pltpu.CompilerParams(
            dimension_semantics=("parallel", "parallel", "arbitrary"),
            vmem_limit_bytes=VMEM_LIMIT),
    )(q, k, v, x, wo, params["bo"], params["g1"], params["be1"])

    # ---- 3) FFN (4H tiled, accumulated) + residual + LayerNorm2 ------------------
    x1_2d = x1.reshape(BS, H)
    out2d = pl.pallas_call(
        ffn_kernel,
        out_shape=jax.ShapeDtypeStruct((BS, H), jnp.float32),
        grid=(BS // TR, FH // TF),
        in_specs=[
            pl.BlockSpec((TR, H), lambda r, f: (r, 0)),
            pl.BlockSpec((H, TF), lambda r, f: (0, f)),
            pl.BlockSpec((1, TF), lambda r, f: (0, f)),
            pl.BlockSpec((TF, H), lambda r, f: (f, 0)),
            pl.BlockSpec((1, H), lambda r, f: (0, 0)),
            pl.BlockSpec((1, H), lambda r, f: (0, 0)),
            pl.BlockSpec((1, H), lambda r, f: (0, 0)),
        ],
        out_specs=pl.BlockSpec((TR, H), lambda r, f: (r, 0)),
        scratch_shapes=[pltpu.VMEM((TR, H), jnp.float32)],
        compiler_params=pltpu.CompilerParams(
            dimension_semantics=("parallel", "arbitrary"),
            vmem_limit_bytes=VMEM_LIMIT),
    )(x1_2d, w1, params["b1"], w2, params["b2"], params["g2"], params["be2"])

    return out2d.reshape(B, S, H)


# --------------------------------------------------------------------------- #
# Pure-JAX reference mirroring the PyTorch forward (eval mode, f32).
# --------------------------------------------------------------------------- #
def reference_jax(x, params, num_heads):
    B, S, H = x.shape
    d = H // num_heads
    q = x @ params["wq"] + params["bq"]
    k = x @ params["wk"] + params["bk"]
    v = x @ params["wv"] + params["bv"]
    q = q.reshape(B, S, num_heads, d).transpose(0, 2, 1, 3)
    k = k.reshape(B, S, num_heads, d).transpose(0, 2, 1, 3)
    v = v.reshape(B, S, num_heads, d).transpose(0, 2, 1, 3)
    scores = jnp.einsum("bhqd,bhkd->bhqk", q, k) / math.sqrt(d)
    attn = jax.nn.softmax(scores, axis=-1)
    ctx = jnp.einsum("bhqk,bhkd->bhqd", attn, v).transpose(0, 2, 1, 3).reshape(B, S, H)
    attn_out = ctx @ params["wo"] + params["bo"]

    def ln(v_, g, b):
        mu = jnp.mean(v_, axis=-1, keepdims=True)
        var = jnp.mean((v_ - mu) ** 2, axis=-1, keepdims=True)
        return (v_ - mu) / jnp.sqrt(var + 1e-5) * g + b

    x1 = ln(x + attn_out, params["g1"], params["be1"])
    h1 = jax.nn.gelu(x1 @ params["w1"] + params["b1"], approximate=False)
    ff = h1 @ params["w2"] + params["b2"]
    return ln(x1 + ff, params["g2"], params["be2"])


def init_params(key, hidden_size):
    H = hidden_size
    ks = jax.random.split(key, 8)
    s = 0.05
    return {
        "wq": jax.random.normal(ks[0], (H, H), jnp.float32) * s,
        "bq": jnp.zeros((1, H), jnp.float32) + 0.01,
        "wk": jax.random.normal(ks[1], (H, H), jnp.float32) * s,
        "bk": jnp.zeros((1, H), jnp.float32) - 0.01,
        "wv": jax.random.normal(ks[2], (H, H), jnp.float32) * s,
        "bv": jnp.zeros((1, H), jnp.float32) + 0.02,
        "wo": jax.random.normal(ks[3], (H, H), jnp.float32) * s,
        "bo": jnp.zeros((1, H), jnp.float32),
        "g1": jnp.ones((1, H), jnp.float32),
        "be1": jnp.zeros((1, H), jnp.float32),
        "w1": jax.random.normal(ks[4], (H, 4 * H), jnp.float32) * s,
        "b1": jnp.zeros((1, 4 * H), jnp.float32) + 0.01,
        "w2": jax.random.normal(ks[5], (4 * H, H), jnp.float32) * s,
        "b2": jnp.zeros((1, H), jnp.float32),
        "g2": jnp.ones((1, H), jnp.float32),
        "be2": jnp.zeros((1, H), jnp.float32),
    }


if __name__ == "__main__":
    B, S, H, num_heads = 2, 8, 32, 4
    key = jax.random.PRNGKey(0)
    kx, kp = jax.random.split(key)
    x = jax.random.normal(kx, (B, S, H), jnp.float32)
    params = init_params(kp, H)

    out = transformer_layer(x, params, num_heads)
    out = jax.block_until_ready(out)

    ref = reference_jax(x, params, num_heads)
    assert out.shape == (B, S, H)
    # bf16 matmul operands (f32 accumulation) -> loosen tolerance vs the f32 reference.
    assert jnp.allclose(out, ref, atol=2e-2, rtol=2e-2), \
        f"max err {jnp.max(jnp.abs(out - ref))}"
    print("KERNEL_OK")
</pallas_src>

<mosaic_0001>
module attributes {stable_mosaic.version = 11 : i64} {
  func.func @qkv_proj_kernel(%arg0: i32, %arg1: i32, %arg2: memref<16x32xf32, #tpu.memory_space<vmem>>, %arg3: memref<32x96xbf16, #tpu.memory_space<vmem>>, %arg4: memref<1x96xf32, #tpu.memory_space<vmem>>, %arg5: memref<16x96xbf16, #tpu.memory_space<vmem>>) attributes {dimension_semantics = [#tpu.dimension_semantics<parallel>, #tpu.dimension_semantics<parallel>], iteration_bounds = array<i64: 1, 1>, scalar_prefetch = 0 : i64, scratch_operands = 0 : i64, tpu.core_type = #tpu.core_type<tc>, window_params = [{transform_indices = @transform_0, window_bounds = array<i64: 16, 32>}, {transform_indices = @transform_1, window_bounds = array<i64: 32, 96>}, {transform_indices = @transform_2, window_bounds = array<i64: 1, 96>}, {transform_indices = @transform_3, window_bounds = array<i64: 16, 96>}]} {
    %c0 = arith.constant 0 : index
    %c0_0 = arith.constant 0 : index
    %0 = vector.load %arg2[%c0, %c0_0] : memref<16x32xf32, #tpu.memory_space<vmem>>, vector<16x32xf32>
    %1 = arith.truncf %0 : vector<16x32xf32> to vector<16x32xbf16>
    %c0_1 = arith.constant 0 : index
    %c0_2 = arith.constant 0 : index
    %2 = vector.load %arg3[%c0_1, %c0_2] : memref<32x96xbf16, #tpu.memory_space<vmem>>, vector<32x96xbf16>
    %cst = arith.constant dense<0.000000e+00> : vector<16x96xf32>
    %3 = tpu.matmul %1, %2, %cst {dimension_numbers = #tpu.dot_dimension_numbers<[1], [0], [0], [1], [0, 0, 1, 1], [], []>} : vector<16x32xbf16>, vector<32x96xbf16>, vector<16x96xf32> -> vector<16x96xf32>
    %c0_3 = arith.constant 0 : index
    %c0_4 = arith.constant 0 : index
    %4 = vector.load %arg4[%c0_3, %c0_4] : memref<1x96xf32, #tpu.memory_space<vmem>>, vector<1x96xf32>
    %5 = vector.broadcast %4 : vector<1x96xf32> to vector<16x96xf32>
    %6 = arith.addf %3, %5 : vector<16x96xf32>
    %7 = arith.truncf %6 : vector<16x96xf32> to vector<16x96xbf16>
    %c0_5 = arith.constant 0 : index
    %c0_6 = arith.constant 0 : index
    %8 = vector.load %arg5[%c0_5, %c0_6] : memref<16x96xbf16, #tpu.memory_space<vmem>>, vector<16x96xbf16>
    tpu.vector_store %arg5[%c0_5, %c0_6], %7 {strides = array<i32>} : memref<16x96xbf16, #tpu.memory_space<vmem>>, vector<16x96xbf16>,
    return
  }
  func.func @transform_0(%arg0: i32, %arg1: i32) -> (i32, i32) {
    %c0_i32 = arith.constant 0 : i32
    %c0_i32_0 = arith.constant 0 : i32
    return %arg0, %c0_i32 : i32, i32
  }
  func.func @transform_1(%arg0: i32, %arg1: i32) -> (i32, i32) {
    %c0_i32 = arith.constant 0 : i32
    %c0_i32_0 = arith.constant 0 : i32
    return %c0_i32, %arg1 : i32, i32
  }
  func.func @transform_2(%arg0: i32, %arg1: i32) -> (i32, i32) {
    %c0_i32 = arith.constant 0 : i32
    %c0_i32_0 = arith.constant 0 : i32
    return %c0_i32, %arg1 : i32, i32
  }
  func.func @transform_3(%arg0: i32, %arg1: i32) -> (i32, i32) {
    %c0_i32 = arith.constant 0 : i32
    return %arg0, %arg1 : i32, i32
  }
}

</mosaic_0001>

<llo_original>
// kernel: tpu_custom_call.1
$region0: #{tpu_custom_call.1}
  #allocation0 [shape = 'u32[]', space=smem, size = 0x4, offset = 0x4, fixed_abs, tag = 'smem constant byte address 0x4 - core index']
  #allocation1 [shape = 'u32[144,128]{1,0:T(1,128)}', space=vmem, size = 0x12000, scoped, tag = 'internal scratch']
  %s0 = inlined_call_operand.hbm [shape: f32[16,32], index: 0, kind: input, shape index: {}]
  %s1 = inlined_call_operand.hbm [shape: bf16[32,96], index: 1, kind: input, shape index: {}]
  %s2 = inlined_call_operand.vmem [shape: f32[1,96], index: 2, kind: input, shape index: {}]
  %s3 = inlined_call_operand.hbm [shape: bf16[16,96], index: 3, kind: output, shape index: {}]
  %s4 = sld [smem:[#allocation0]]
  $region30: #{tpu_custom_call.1} parent=0
    _
  %s6 = ssub.s32 1, %s4
  %s7 = scalar_select 0, %s6, %s4
  $region1: #{tpu_custom_call.1} parent=0
    #allocation2 [shape = 'u8[8192]{0}', space=vmem, size = 0x2000, scoped, tag = 'input window, operand 0, single buffered']
    #allocation3 [shape = 's32[1]{0}', space=sflag, size = 0x4, scoped, tag = 'scoped memory for tpu_custom_call.1']
    #allocation4 [shape = 's32[1]{0}', space=sflag, size = 0x4, scoped, tag = 'scoped memory for tpu_custom_call.1']
    #allocation5 [shape = 'u8[8192]{0}', space=vmem, size = 0x2000, scoped, tag = 'input window, operand 1, single buffered']
    #allocation6 [shape = 's32[1]{0}', space=sflag, size = 0x4, scoped, tag = 'scoped memory for tpu_custom_call.1']
    #allocation7 [shape = 'u8[4096]{0}', space=vmem, size = 0x1000, scoped, tag = 'output window, operand 0, single buffered']
    %8 = vsyncpa [#allocation3], 0
    %9 = vsyncpa [#allocation6], 0
    %10 = vsyncpa [#allocation4], 0
    // Predicated region
    $region2: #{tpu_custom_call.1} parent=1 // pred_check
      _
    $region3: #{tpu_custom_call.1} parent=1 // pred_check_branch
      %12 = sbr.rel (0) target = $region5
    $region4: #{tpu_custom_call.1} parent=1 // pred_region
      %s14 = ssub.s32 256, 256
      %15 = vsyncadd [#allocation3], %s14
      %s16 = sshll.u32 [#allocation2], 4
      %s17 = int_to_ptr.vmem [resolvable:$true] %s16
      %22 = dma.hbm_to_vmem [thread:$0]  %s0, 256, %s17, [#allocation3], 128, 128, 8
    $region5: #{tpu_custom_call.1} parent=1 // pred_fallthru
      _
    // Predicated region
    $region6: #{tpu_custom_call.1} parent=1 // pred_check
      _
    $region7: #{tpu_custom_call.1} parent=1 // pred_check_branch
      %24 = sbr.rel (0) target = $region9
    $region8: #{tpu_custom_call.1} parent=1 // pred_region
      %s26 = ssub.s32 256, 256
      %27 = vsyncadd [#allocation6], %s26
      %s28 = sshll.u32 [#allocation5], 4
      %s29 = int_to_ptr.vmem [resolvable:$true] %s28
      %34 = dma.hbm_to_vmem [thread:$0]  %s1, 256, %s29, [#allocation6], 64, 64, 4
    $region9: #{tpu_custom_call.1} parent=1 // pred_fallthru
      _
    // Predicated region
    $region10: #{tpu_custom_call.1} parent=1 // pred_check
      _
    $region11: #{tpu_custom_call.1} parent=1 // pred_check_branch
      %36 = sbr.rel (0) target = $region13
    $region12: #{tpu_custom_call.1} parent=1 // pred_region
      _
    $region13: #{tpu_custom_call.1} parent=1 // pred_fallthru
      _
    // Predicated region
    $region14: #{tpu_custom_call.1} parent=1 // pred_check
      _
    $region15: #{tpu_custom_call.1} parent=1 // pred_check_branch
      %38 = sbr.rel (0) target = $region17
    $region16: #{tpu_custom_call.1} parent=1 // pred_region
      %39 = dma.done [#allocation3], 256
    $region17: #{tpu_custom_call.1} parent=1 // pred_fallthru
      _
    // Predicated region
    $region18: #{tpu_custom_call.1} parent=1 // pred_check
      _
    $region19: #{tpu_custom_call.1} parent=1 // pred_check_branch
      %41 = sbr.rel (0) target = $region21
    $region20: #{tpu_custom_call.1} parent=1 // pred_region
      %42 = dma.done [#allocation6], 256
    $region21: #{tpu_custom_call.1} parent=1 // pred_fallthru
      _
    %v44 = vld [vmem:[#allocation2] sm:$0xff]
    %v45 = vld [vmem:[#allocation2 + $0x8] sm:$0xff]
    %v46 = vpack.c.bf16 %v45, %v44
    %v47 = vld [vmem:[#allocation5] sm:$0xf]
    %v48 = vld [vmem:[#allocation5 + $0x4] sm:$0xf]
    %v49 = vld [vmem:[#allocation5 + $0x8] sm:$0xf]
    %v50 = vld [vmem:[#allocation5 + $0xc] sm:$0xf]
    %v51 = vld [vmem:[%s2] sm:$0x1]
    %v53 = vlaneseq
    %v54 = vshrl.u32 %v53, 7
    %v55 = vsub.s32 0, %v54
    %v56 = vrot.slane %v51, %v55
    %v62 = vunpack.c.l.b16 %v47
    %v63 = vunpack.c.l.b16 %v48
    %v64 = vunpack.c.l.b16 %v49
    %v65 = vunpack.c.l.b16 %v50
    %v66 = vpack.c.b16 %v63, %v62
    %v67 = vpack.c.b16 %v65, %v64
    %vm70 = vcmask 261120
    %v72 = vsel %vm70, %v46, 0
    %74 = vmatprep.subr.bf16.mxu0 0
    %75 = vmatpush1.bf16.msra.mxu0 %v66
    %76 = vmatprep.subr.bf16.mxu0 0
    %77 = vmatpush1.bf16.msra.mxu0 %v67
    %78 = vmatprep.subr.bf16.mxu0 0
    %79 = vmatpush1.bf16.msra.mxu0 0
    %80 = vmatprep.subr.bf16.mxu0 0
    %81 = vmatpush1.bf16.msra.mxu0 0
    %82 = vmatprep.subr.bf16.mxu0 0
    %83 = vmatpush1.bf16.msra.mxu0 0
    %84 = vmatprep.subr.bf16.mxu0 0
    %85 = vmatpush1.bf16.msra.mxu0 0
    %86 = vmatprep.subr.bf16.mxu0 0
    %87 = vmatpush1.bf16.msra.mxu0 0
    %88 = vmatprep.subr.bf16.mxu0 0
    %89 = vmatpush1.bf16.msra.mxu0 0
    %90 = vmatprep.subr.bf16.mxu0 0
    %91 = vmatpush1.bf16.msra.mxu0 0
    %92 = vmatprep.subr.bf16.mxu0 0
    %93 = vmatpush1.bf16.msra.mxu0 0
    %94 = vmatprep.subr.bf16.mxu0 0
    %95 = vmatpush1.bf16.msra.mxu0 0
    %96 = vmatprep.subr.bf16.mxu0 0
    %97 = vmatpush1.bf16.msra.mxu0 0
    %98 = vmatprep.subr.bf16.mxu0 0
    %99 = vmatpush1.bf16.msra.mxu0 0
    %100 = vmatprep.subr.bf16.mxu0 0
    %101 = vmatpush1.bf16.msra.mxu0 0
    %102 = vmatprep.subr.bf16.mxu0 0
    %103 = vmatpush1.bf16.msra.mxu0 0
    %104 = vmatprep.subr.bf16.mxu0 0
    %105 = vmatpush1.bf16.msra.mxu0 0
    %106 = vmatprep.mubr.bf16.mxu0 0
    %107 = vmatmul.mubr.bf16.gmra.mrb[0].mxu0 %v72
    %v108 = vpop.f32.mrb[0].mxu0
    %v109 = vadd.f32 %v56, %v108
    %v110 = vpop.f32.mrb[0].mxu0
    %v111 = vpop.f32.mrb[0].mxu0
    %v112 = vadd.f32 %v56, %v111
    %v113 = vpop.f32.mrb[0].mxu0
    %114 = vdwg.mxu0
    %v115 = vpack.c.bf16 %v112, %v109
    %v117 = vunpack.c.l.b16 %v115
    %v118 = vunpack.c.h.b16 %v115
    %v119 = vpack.c.b16 %v117, %v117
    %v120 = vpack.c.b16 %v118, %v118
    %vm123 = vcmask 781312
    %124 = vst.msk [vmem:[#allocation7] sm:$0xf] %vm123, %v119
    %125 = vst.msk [vmem:[#allocation7 + $0x4] sm:$0xf] %vm123, %v120
    // Predicated region
    $region22: #{tpu_custom_call.1} parent=1 // pred_check
      _
    $region23: #{tpu_custom_call.1} parent=1 // pred_check_branch
      %127 = sbr.rel (0) target = $region25
    $region24: #{tpu_custom_call.1} parent=1 // pred_region
      %s129 = ssub.s32 128, 128
      %130 = vsyncadd [#allocation4], %s129
      %s131 = sshll.u32 [#allocation7], 4
      %s132 = int_to_ptr.vmem [resolvable:$true] %s131
      %137 = dma.vmem_to_hbm [thread:$0]  %s132, 128, %s3, [#allocation4], 64, 64, 4
    $region25: #{tpu_custom_call.1} parent=1 // pred_fallthru
      _
    // Predicated region
    $region26: #{tpu_custom_call.1} parent=1 // pred_check
      _
    $region27: #{tpu_custom_call.1} parent=1 // pred_check_branch
      %139 = sbr.rel (0) target = $region29
    $region28: #{tpu_custom_call.1} parent=1 // pred_region
      %140 = dma.done [#allocation4], 128
    $region29: #{tpu_custom_call.1} parent=1 // pred_fallthru
      _
    %141 = vsyncpa [#allocation3], 1
    %142 = vsyncpa [#allocation6], 1
    %143 = vsyncpa [#allocation4], 1

</llo_original>
